<compile_context>
chip_gen: v5e
topology: v5e:2x2
jax: 0.10.0
libtpu: 0.0.40
codegen_flags: <defaults>
</compile_context>

<pallas_src>
import functools

import numpy as np
import jax
import jax.numpy as jnp
from jax import lax
from jax.experimental import pallas as pl
from jax.experimental.pallas import tpu as pltpu

KSIZE = 7
PAD = KSIZE // 2  # 3


@functools.lru_cache(maxsize=None)
def _roll_shift_sign():
    """Probe pltpu.roll's rotation direction once with a tiny kernel.

    The conv taps need `shifted[p] == plane[p + d]`; under jnp.roll semantics
    that is shift == -d (sign -1).  Probing keeps the taps correct even if the
    rotate lowering's direction convention differs.
    """
    def probe(x_ref, o_ref):
        o_ref[...] = pltpu.roll(x_ref[...], 1, axis=1)

    x = jnp.tile(jnp.arange(128, dtype=jnp.float32), (8, 1))
    out = pl.pallas_call(
        probe, out_shape=jax.ShapeDtypeStruct((8, 128), jnp.float32))(x)
    # jnp.roll semantics: out[0, 0] == x[0, -1] == 127  ->  use shift = -d.
    return -1 if float(out[0, 0]) == 127.0 else 1


def _spatial_attention_kernel(w_ref, x_ref, o_ref, sum_ref, max_ref, *,
                              C, TC, H, W, roll_sign):
    """One (sample, channel-tile) grid step.

    w_ref  : SMEM f32[2*7*7]    flattened conv weight, layout [cin, kh, kw]
    x_ref  : VMEM (TC, H*W)     channel tile of one sample (lane-dense)
    o_ref  : VMEM (1, H*W)      attention map for this sample (lane-dense)
    sum_ref: VMEM (1, H*W) f32  running channel sum
    max_ref: VMEM (1, H*W) f32  running channel max
    """
    HW = H * W
    c_step = pl.program_id(1)
    n_csteps = pl.num_programs(1)

    # ---- lane-dense partial channel reduction over this (TC, H*W) tile ----
    x = x_ref[...].astype(jnp.float32)                         # (TC, HW)

    if C % TC != 0:
        # Last channel tile is partial: mask out-of-range channels.
        chan = c_step * TC + lax.broadcasted_iota(jnp.int32, (TC, HW), 0)
        valid = chan < C
        x_sum = jnp.where(valid, x, 0.0)
        x_max = jnp.where(valid, x, -jnp.inf)
    else:
        x_sum = x
        x_max = x

    part_sum = jnp.sum(x_sum, axis=0, keepdims=True)           # (1, HW)
    part_max = jnp.max(x_max, axis=0, keepdims=True)           # (1, HW)

    @pl.when(c_step == 0)
    def _():
        sum_ref[...] = part_sum
        max_ref[...] = part_max

    @pl.when(c_step != 0)
    def _():
        sum_ref[...] = sum_ref[...] + part_sum
        max_ref[...] = jnp.maximum(max_ref[...], part_max)

    # ---- 7x7 conv + sigmoid, once per sample, on the reduced planes ----
    @pl.when(c_step == n_csteps - 1)
    def _():
        avg = sum_ref[...] * jnp.float32(1.0 / C)              # (1, HW)
        planes = jnp.concatenate([avg, max_ref[...]], axis=0)  # (2, HW)

        flat = lax.broadcasted_iota(jnp.int32, (1, HW), 1)
        row_idx = flat // W                                    # h of each pos
        col_idx = flat - row_idx * W                           # w of each pos

        acc = jnp.zeros((1, HW), jnp.float32)
        for ki in range(KSIZE):
            dh = ki - PAD
            row_ok = jnp.logical_and(row_idx + dh >= 0, row_idx + dh < H)
            for kj in range(KSIZE):
                dw = kj - PAD
                col_ok = jnp.logical_and(col_idx + dw >= 0, col_idx + dw < W)
                ok = jnp.logical_and(row_ok, col_ok)           # (1, HW)
                d = dh * W + dw                                # flat tap offset
                if d == 0:
                    shifted = planes
                else:
                    # shifted[p] == planes[p + d]; wrapped lanes masked below.
                    shifted = pltpu.roll(planes, (roll_sign * d) % HW, axis=1)
                shifted = jnp.where(ok, shifted, 0.0)          # (2, HW)
                w_avg = w_ref[0 * KSIZE * KSIZE + ki * KSIZE + kj]
                w_max = w_ref[1 * KSIZE * KSIZE + ki * KSIZE + kj]
                acc = acc + w_avg * shifted[0:1, :] + w_max * shifted[1:2, :]

        o_ref[...] = jax.nn.sigmoid(acc).astype(o_ref.dtype)


def _choose_channel_tile(C, HW, itemsize, budget_bytes):
    """Largest channel tile whose input block stays within `budget_bytes`
    (the pipeline double-buffers it).  Keeps the second-to-last block dim a
    multiple of 8 (f32 sublane tile) unless it equals C."""
    max_tc = max(1, int(budget_bytes) // (HW * int(itemsize)))
    if C <= max_tc:
        return C
    return max(8, (max_tc // 8) * 8)


def spatial_attention(x, weight, *, channel_tile=None,
                      block_budget_bytes=8 * 1024 * 1024,
                      vmem_limit_bytes=40 * 1024 * 1024):
    """SpatialAttention forward: x (N,C,H,W), weight (1,2,7,7) -> (N,1,H,W)."""
    N, C, H, W = x.shape
    HW = H * W

    # Lane-dense layout for the reduction and the output store.
    x_flat = x.reshape(N, C, HW)
    w_flat = weight.reshape(-1).astype(jnp.float32)            # (98,)

    if channel_tile is None:
        channel_tile = _choose_channel_tile(C, HW, x.dtype.itemsize,
                                            block_budget_bytes)
    tc = min(int(channel_tile), C)
    if tc != C:
        tc = max(8, (tc // 8) * 8)        # keep sublane block dim 8-aligned
        if tc >= C:
            tc = C
    n_ct = pl.cdiv(C, tc)

    kernel = functools.partial(
        _spatial_attention_kernel, C=C, TC=tc, H=H, W=W,
        roll_sign=_roll_shift_sign())

    out_flat = pl.pallas_call(
        kernel,
        out_shape=jax.ShapeDtypeStruct((N, 1, HW), x.dtype),
        grid_spec=pltpu.PrefetchScalarGridSpec(
            num_scalar_prefetch=0,
            grid=(N, n_ct),                      # channel (reduction) axis last
            in_specs=[
                # conv weights: tiny, whole array in SMEM, read as scalars
                pl.BlockSpec(memory_space=pltpu.MemorySpace.SMEM),
                # one channel tile of one sample per grid step (lane-dense)
                pl.BlockSpec((pl.Squeezed(), tc, HW), lambda n, c: (n, c, 0)),
            ],
            # same output block across the channel axis -> resident accumulator
            out_specs=pl.BlockSpec((pl.Squeezed(), 1, HW),
                                   lambda n, c: (n, 0, 0)),
            scratch_shapes=[
                pltpu.VMEM((1, HW), jnp.float32),   # running channel sum
                pltpu.VMEM((1, HW), jnp.float32),   # running channel max
            ],
        ),
        compiler_params=pltpu.CompilerParams(
            # Batch axis shards across TensorCores (v7x megacore); the channel
            # accumulation axis must stay "arbitrary".
            dimension_semantics=("parallel", "arbitrary"),
            vmem_limit_bytes=vmem_limit_bytes,
        ),
    )(w_flat, x_flat)

    return out_flat.reshape(N, 1, H, W)


def spatial_attention_reference(x, weight):
    """Plain-JAX reference matching the PyTorch module."""
    avg = jnp.mean(x, axis=1, keepdims=True)
    mx = jnp.max(x, axis=1, keepdims=True)
    cat = jnp.concatenate([avg, mx], axis=1)
    y = lax.conv_general_dilated(
        cat, weight, window_strides=(1, 1),
        padding=[(PAD, PAD), (PAD, PAD)],
        dimension_numbers=("NCHW", "OIHW", "NCHW"))
    return jax.nn.sigmoid(y)


if __name__ == "__main__":
    key = jax.random.PRNGKey(0)
    kx, kw = jax.random.split(key)

    N, C, H, W = 2, 16, 16, 16
    x = jax.random.normal(kx, (N, C, H, W), dtype=jnp.float32)
    # Deterministic synthetic conv weight (Conv2d(2, 1, 7, bias=False)).
    weight = jax.random.normal(kw, (1, 2, KSIZE, KSIZE), dtype=jnp.float32) * 0.1

    ref = jax.block_until_ready(spatial_attention_reference(x, weight))

    # Multi-step channel accumulation path (two channel tiles per sample).
    out_tiled = jax.block_until_ready(
        spatial_attention(x, weight, channel_tile=8))
    np.testing.assert_allclose(np.asarray(out_tiled), np.asarray(ref),
                               rtol=1e-5, atol=1e-5)

    # Auto-sized tile (whole C in one step).
    out_auto = jax.block_until_ready(spatial_attention(x, weight))
    np.testing.assert_allclose(np.asarray(out_auto), np.asarray(ref),
                               rtol=1e-5, atol=1e-5)

    assert out_tiled.shape == (N, 1, H, W), out_tiled.shape
    print("KERNEL_OK")
</pallas_src>

<mosaic_0001>
module attributes {stable_mosaic.version = 11 : i64} {
  func.func @probe(%arg0: memref<8x128xf32, #tpu.memory_space<vmem>>, %arg1: memref<8x128xf32, #tpu.memory_space<vmem>>) attributes {dimension_semantics = [], scalar_prefetch = 0 : i64, scratch_operands = 0 : i64, tpu.core_type = #tpu.core_type<tc>} {
    %c0 = arith.constant 0 : index
    %c0_0 = arith.constant 0 : index
    %0 = vector.load %arg0[%c0, %c0_0] : memref<8x128xf32, #tpu.memory_space<vmem>>, vector<8x128xf32>
    %c1_i32 = arith.constant 1 : i32
    %1 = tpu.dynamic_rotate %0 by %c1_i32 dim 1 : vector<8x128xf32>, i32 -> vector<8x128xf32>
    %c0_1 = arith.constant 0 : index
    %c0_2 = arith.constant 0 : index
    %2 = vector.load %arg1[%c0_1, %c0_2] : memref<8x128xf32, #tpu.memory_space<vmem>>, vector<8x128xf32>
    tpu.vector_store %arg1[%c0_1, %c0_2], %1 {strides = array<i32>} : memref<8x128xf32, #tpu.memory_space<vmem>>, vector<8x128xf32>,
    return
  }
}

</mosaic_0001>

<llo_original>
// kernel: tpu_custom_call.1
$region0: #{tpu_custom_call.1}
  #allocation0 [shape = 'u32[]', space=smem, size = 0x4, offset = 0x4, fixed_abs, tag = 'smem constant byte address 0x4 - core index']
  #allocation1 [shape = 'u32[72,128]{1,0:T(1,128)}', space=vmem, size = 0x9000, scoped, tag = 'internal scratch']
  %s0 = inlined_call_operand.hbm [shape: f32[8,128], index: 0, kind: input, shape index: {}]
  %s1 = inlined_call_operand.hbm [shape: f32[8,128], index: 1, kind: output, shape index: {}]
  %s2 = sld [smem:[#allocation0]]
  $region18: #{tpu_custom_call.1} parent=0
    _
  %s4 = ssub.s32 1, %s2
  %s5 = scalar_select 0, %s4, %s2
  $region1: #{tpu_custom_call.1} parent=0
    #allocation2 [shape = 'u8[4096]{0}', space=vmem, size = 0x1000, scoped, tag = 'input window, operand 0, single buffered']
    #allocation3 [shape = 's32[1]{0}', space=sflag, size = 0x4, scoped, tag = 'scoped memory for tpu_custom_call.1']
    #allocation4 [shape = 's32[1]{0}', space=sflag, size = 0x4, scoped, tag = 'scoped memory for tpu_custom_call.1']
    #allocation5 [shape = 'u8[4096]{0}', space=vmem, size = 0x1000, scoped, tag = 'output window, operand 0, single buffered']
    %6 = vsyncpa [#allocation3], 0
    %7 = vsyncpa [#allocation4], 0
    // Predicated region
    $region2: #{tpu_custom_call.1} parent=1 // pred_check
      _
    $region3: #{tpu_custom_call.1} parent=1 // pred_check_branch
      %9 = sbr.rel (0) target = $region5
    $region4: #{tpu_custom_call.1} parent=1 // pred_region
      %11 = vsyncadd [#allocation3], 0
      %s13 = sshll.u32 %s0, 4
      %s14 = int_to_ptr.hbm [resolvable:$true] %s13
      %s15 = sshll.u32 [#allocation2], 4
      %s16 = int_to_ptr.vmem [resolvable:$true] %s15
      %18 = dma.hbm_to_vmem [thread:$0]  %s14, 128, %s16, [#allocation3]
    $region5: #{tpu_custom_call.1} parent=1 // pred_fallthru
      _
    // Predicated region
    $region6: #{tpu_custom_call.1} parent=1 // pred_check
      _
    $region7: #{tpu_custom_call.1} parent=1 // pred_check_branch
      %20 = sbr.rel (0) target = $region9
    $region8: #{tpu_custom_call.1} parent=1 // pred_region
      %22 = dma.done [#allocation3], 128
    $region9: #{tpu_custom_call.1} parent=1 // pred_fallthru
      _
    %v23 = vld [vmem:[#allocation2] sm:$0xff]
    %24 = vrot.lane.b32.xlu0 %v23, 1
    %v25 = vpop.permute.xlu0 %24
    %26 = vst [vmem:[#allocation5] sm:$0xff] %v25
    // Predicated region
    $region10: #{tpu_custom_call.1} parent=1 // pred_check
      _
    $region11: #{tpu_custom_call.1} parent=1 // pred_check_branch
      %28 = sbr.rel (0) target = $region13
    $region12: #{tpu_custom_call.1} parent=1 // pred_region
      %30 = vsyncadd [#allocation4], 0
      %s32 = sshll.u32 [#allocation5], 4
      %s33 = int_to_ptr.vmem [resolvable:$true] %s32
      %s34 = sshll.u32 %s1, 4
      %s35 = int_to_ptr.hbm [resolvable:$true] %s34
      %37 = dma.vmem_to_hbm [thread:$0]  %s33, 128, %s35, [#allocation4]
    $region13: #{tpu_custom_call.1} parent=1 // pred_fallthru
      _
    // Predicated region
    $region14: #{tpu_custom_call.1} parent=1 // pred_check
      _
    $region15: #{tpu_custom_call.1} parent=1 // pred_check_branch
      %39 = sbr.rel (0) target = $region17
    $region16: #{tpu_custom_call.1} parent=1 // pred_region
      %41 = dma.done [#allocation4], 128
    $region17: #{tpu_custom_call.1} parent=1 // pred_fallthru
      _
    %42 = vsyncpa [#allocation3], 1
    %43 = vsyncpa [#allocation4], 1

</llo_original>
